<compile_context>
chip_gen: v7x
topology: tpu7x:2x2x1
jax: 0.10.0
libtpu: 0.0.40
codegen_flags: <defaults>
</compile_context>

<pallas_src>
import functools

import jax
import jax.numpy as jnp
from jax import lax
from jax.experimental import pallas as pl
from jax.experimental.pallas import tpu as pltpu

IGNORE_INDEX = 255


def _round_up(x: int, m: int) -> int:
    return ((x + m - 1) // m) * m


def _vmem_budget():
    """(tile byte budget, scoped vmem limit) derived from the TPU generation."""
    cap = 128 * 1024 * 1024
    try:
        cap = int(pltpu.get_tpu_info().vmem_capacity_bytes)
    except Exception:
        pass
    # v5e/v6e (128 MiB physical) -> 64 MiB scoped limit; v7x (64 MiB) -> 32 MiB.
    limit = min(max(cap // 2, 32 * 1024 * 1024), 64 * 1024 * 1024)
    budget = limit // 2          # headroom for Mosaic scheduling / spills
    return budget, limit


def _choose_tile_rows(total_rows, *, logit_lanes, logit_itemsize, temp_arrays,
                      budget):
    """Rows per block so 2x-buffered inputs + in-kernel temporaries fit VMEM."""
    lane_pad = _round_up(max(logit_lanes, 1), 128)
    per_row = 2 * lane_pad * logit_itemsize        # logits tile, double-buffered
    per_row += 2 * 128 * 4                         # labels tile (lane-padded), x2 buffers
    per_row += temp_arrays * lane_pad * 4          # f32/i32 temporaries inside the kernel
    rows = budget // per_row
    rows = min(rows, 8192, _round_up(max(total_rows, 1), 16))
    rows = max(16, (rows // 16) * 16)              # sublane-multiple for f32 and bf16
    return int(rows)


def _ce_packed_kernel(logits_ref, labels_ref, sum_ref, cnt_ref, *,
                      num_classes, ignore_index):
    """Small-C lane-dense path: each 128-lane row holds 128/C pixels x C classes."""
    c = num_classes
    log2c = c.bit_length() - 1
    p = 128 // c

    x = logits_ref[...].astype(jnp.float32)        # (TN, 128), cast in VMEM
    lab = labels_ref[...]                          # (TN, P) int32

    tn = x.shape[0]
    lane = lax.broadcasted_iota(jnp.int32, (tn, 128), 1)
    cls = lane & (c - 1)                           # class index within a pixel segment

    # Broadcast each pixel's label to its C lanes via a tiny MXU matmul:
    # E[p_idx, lane] = 1.0 where lane // C == p_idx.  Exact for small int labels.
    pe = lax.broadcasted_iota(jnp.int32, (p, 128), 0)
    le = lax.broadcasted_iota(jnp.int32, (p, 128), 1)
    e_mat = (pe == (le >> log2c)).astype(jnp.float32)
    lab_lane = jnp.dot(lab.astype(jnp.float32), e_mat,
                       preferred_element_type=jnp.float32)          # (TN, 128)
    valid_lane = lab_lane != jnp.float32(ignore_index)
    hit = (cls.astype(jnp.float32) == lab_lane) & valid_lane

    # Per-pixel max: XOR-butterfly allreduce within each aligned C-lane segment.
    # pltpu.roll follows jnp.roll semantics; shifts kept non-negative.
    m = x
    for k in range(log2c):
        s = 1 << k
        up = pltpu.roll(m, 128 - s, axis=1)        # value from lane + s
        dn = pltpu.roll(m, s, axis=1)              # value from lane - s
        m = jnp.maximum(m, jnp.where((lane & s) == 0, up, dn))

    e = jnp.exp(x - m)

    # Per-pixel sum(exp) via segment-sum matmul: S[lane, p_idx] = (lane//C == p_idx).
    ls = lax.broadcasted_iota(jnp.int32, (128, p), 0)
    ps = lax.broadcasted_iota(jnp.int32, (128, p), 1)
    s_mat = ((ls >> log2c) == ps).astype(jnp.float32)
    s_pix = jnp.dot(e, s_mat, preferred_element_type=jnp.float32)   # (TN, P)

    valid = lab != ignore_index                                     # (TN, P)
    # sum over valid pixels of (m_p + log(sum_exp_p) - x[p, label_p]); undefined
    # ragged-tail rows have padded ignore labels, so every term masks them out.
    log_term = jnp.sum(jnp.where(valid, jnp.log(s_pix), 0.0))
    m_term = jnp.sum(jnp.where((cls == 0) & valid_lane, m, 0.0))
    tgt_term = jnp.sum(jnp.where(hit, x, 0.0))

    sum_ref[...] = (log_term + m_term - tgt_term).reshape(1, 1, 1)
    cnt_ref[...] = jnp.sum(valid.astype(jnp.float32)).reshape(1, 1, 1)


def _ce_rowmajor_kernel(logits_ref, labels_ref, sum_ref, cnt_ref, *, ignore_index):
    """General-C fallback: one pixel per (lane-padded) row of the block."""
    x = logits_ref[...].astype(jnp.float32)        # (TN, C)
    lab = labels_ref[...]                          # (TN, 1) int32
    valid = lab != ignore_index

    tn, c = x.shape
    col = lax.broadcasted_iota(jnp.int32, (tn, c), 1)
    tgt = jnp.sum(jnp.where(col == lab, x, 0.0), axis=-1, keepdims=True)

    m = jnp.max(x, axis=-1, keepdims=True)
    lse = m + jnp.log(jnp.sum(jnp.exp(x - m), axis=-1, keepdims=True))

    # Undefined ragged-tail rows have padded ignore labels -> masked to 0 here
    # (jnp.where discards NaN/inf from the unselected branch).
    per_pixel = jnp.where(valid, lse - tgt, 0.0)
    sum_ref[...] = jnp.sum(per_pixel).reshape(1, 1, 1)
    cnt_ref[...] = jnp.sum(valid.astype(jnp.float32)).reshape(1, 1, 1)


def pixel_wise_cross_entropy_loss(predicted_logits: jax.Array,
                                  target_labels: jax.Array,
                                  ignore_index: int = IGNORE_INDEX) -> jax.Array:
    """JAX/Pallas equivalent of PixelWiseCrossEntropyLoss.forward (loss only)."""
    c = predicted_logits.shape[-1]
    logits = predicted_logits.reshape(-1, c)                 # free view, native dtype
    labels = target_labels.reshape(-1).astype(jnp.int32) - 1  # module's `- 1` shift
    n = logits.shape[0]
    itemsize = jnp.dtype(logits.dtype).itemsize
    budget, vmem_limit = _vmem_budget()

    # Lane-dense packed path: C a power of two, 2..64, pixels divisible by 128/C.
    pack = (2 <= c <= 64) and (c & (c - 1)) == 0 and n > 0 and n % (128 // c) == 0

    if pack:
        p = 128 // c
        rows = n // p
        tile_rows = _choose_tile_rows(rows, logit_lanes=128,
                                      logit_itemsize=itemsize,
                                      temp_arrays=12, budget=budget)
        num_blocks = pl.cdiv(rows, tile_rows)
        rows_pad = num_blocks * tile_rows
        x2d = logits.reshape(rows, 128)            # free view: class-minor, contiguous
        lab2d = labels.reshape(rows, p)            # lane-dense labels
        if rows_pad != rows:                       # pad only the small labels array
            lab2d = jnp.pad(lab2d, ((0, rows_pad - rows), (0, 0)),
                            constant_values=ignore_index)
        kernel = functools.partial(_ce_packed_kernel, num_classes=c,
                                   ignore_index=ignore_index)
        in_specs = [pl.BlockSpec((tile_rows, 128), lambda i: (i, 0)),
                    pl.BlockSpec((tile_rows, p), lambda i: (i, 0))]
    else:
        tile_rows = _choose_tile_rows(n, logit_lanes=c, logit_itemsize=itemsize,
                                      temp_arrays=10, budget=budget)
        num_blocks = pl.cdiv(n, tile_rows)
        n_pad = num_blocks * tile_rows
        x2d = logits
        lab1d = labels
        if n_pad != n:
            lab1d = jnp.pad(lab1d, (0, n_pad - n), constant_values=ignore_index)
        lab2d = lab1d.reshape(n_pad, 1)
        kernel = functools.partial(_ce_rowmajor_kernel, ignore_index=ignore_index)
        in_specs = [pl.BlockSpec((tile_rows, c), lambda i: (i, 0)),
                    pl.BlockSpec((tile_rows, 1), lambda i: (i, 0))]

    part_sum, part_cnt = pl.pallas_call(
        kernel,
        out_shape=(jax.ShapeDtypeStruct((num_blocks, 1, 1), jnp.float32),
                   jax.ShapeDtypeStruct((num_blocks, 1, 1), jnp.float32)),
        grid=(num_blocks,),
        in_specs=in_specs,
        out_specs=(pl.BlockSpec((1, 1, 1), lambda i: (i, 0, 0)),
                   pl.BlockSpec((1, 1, 1), lambda i: (i, 0, 0))),
        compiler_params=pltpu.CompilerParams(
            dimension_semantics=("parallel",),     # independent blocks -> v7x 2-TC split
            vmem_limit_bytes=vmem_limit),
    )(x2d, lab2d)

    # Tiny final reduction + mean over non-ignored pixels (nn.CrossEntropyLoss
    # default).  NOTE: if *every* pixel is ignored this divides by zero,
    # matching PyTorch behavior.
    return jnp.sum(part_sum) / jnp.sum(part_cnt)


def _reference_loss(predicted_logits, target_labels, ignore_index=IGNORE_INDEX):
    c = predicted_logits.shape[-1]
    logits = predicted_logits.reshape(-1, c).astype(jnp.float32)
    labels = target_labels.reshape(-1).astype(jnp.int32) - 1
    valid = labels != ignore_index
    safe = jnp.where(valid, labels, 0)
    logz = jax.nn.logsumexp(logits, axis=-1)
    tgt = jnp.take_along_axis(logits, safe[:, None], axis=-1)[:, 0]
    per = jnp.where(valid, logz - tgt, 0.0)
    return jnp.sum(per) / jnp.sum(valid.astype(jnp.float32))


if __name__ == "__main__":
    key = jax.random.PRNGKey(0)
    k1, k2, k3 = jax.random.split(key, 3)

    B, H, W, C = 2, 16, 16, 8
    logits = jax.random.normal(k1, (B, H, W, C), dtype=jnp.float32)
    # labels in [1, C]; sprinkle ignore pixels encoded as 256 (-> 255 after -1)
    labels = jax.random.randint(k2, (B, H, W), 1, C + 1, dtype=jnp.int32)
    ignore_mask = jax.random.bernoulli(k3, 0.1, (B, H, W))
    labels = jnp.where(ignore_mask, 256, labels)

    loss = pixel_wise_cross_entropy_loss(logits, labels)
    jax.block_until_ready(loss)

    ref = _reference_loss(logits, labels)
    assert jnp.allclose(loss, ref, rtol=1e-5, atol=1e-5), (loss, ref)
    print("KERNEL_OK")
</pallas_src>

<mosaic_0001>
module attributes {stable_mosaic.version = 11 : i64} {
  func.func @_ce_packed_kernel(%arg0: i32, %arg1: memref<32x128xf32, #tpu.memory_space<vmem>>, %arg2: memref<32x16xi32, #tpu.memory_space<vmem>>, %arg3: memref<1x1x1xf32, #tpu.memory_space<vmem>>, %arg4: memref<1x1x1xf32, #tpu.memory_space<vmem>>) attributes {dimension_semantics = [#tpu.dimension_semantics<parallel>], iteration_bounds = array<i64: 1>, scalar_prefetch = 0 : i64, scratch_operands = 0 : i64, tpu.core_type = #tpu.core_type<tc>, window_params = [{transform_indices = @transform_0, window_bounds = array<i64: 32, 128>}, {transform_indices = @transform_1, window_bounds = array<i64: 32, 16>}, {transform_indices = @transform_2, window_bounds = array<i64: 1, 1, 1>}, {transform_indices = @transform_3, window_bounds = array<i64: 1, 1, 1>}]} {
    %c0 = arith.constant 0 : index
    %c0_0 = arith.constant 0 : index
    %0 = vector.load %arg1[%c0, %c0_0] : memref<32x128xf32, #tpu.memory_space<vmem>>, vector<32x128xf32>
    %c0_1 = arith.constant 0 : index
    %c0_2 = arith.constant 0 : index
    %1 = vector.load %arg2[%c0_1, %c0_2] : memref<32x16xi32, #tpu.memory_space<vmem>>, vector<32x16xi32>
    %2 = tpu.iota {dimensions = array<i32: 1>} : vector<32x128xi32>
    %c7_i32 = arith.constant 7 : i32
    %3 = vector.broadcast %c7_i32 : i32 to vector<32x128xi32>
    %4 = arith.andi %2, %3 : vector<32x128xi32>
    %5 = tpu.iota {dimensions = array<i32: 0>} : vector<16x128xi32>
    %6 = tpu.iota {dimensions = array<i32: 1>} : vector<16x128xi32>
    %c3_i32 = arith.constant 3 : i32
    %7 = vector.broadcast %c3_i32 : i32 to vector<16x128xi32>
    %8 = arith.shrsi %6, %7 : vector<16x128xi32>
    %9 = arith.cmpi eq, %5, %8 : vector<16x128xi32>
    %10 = arith.extui %9 : vector<16x128xi1> to vector<16x128xi32>
    %11 = arith.sitofp %10 : vector<16x128xi32> to vector<16x128xf32>
    %12 = arith.sitofp %1 : vector<32x16xi32> to vector<32x16xf32>
    %cst = arith.constant dense<0.000000e+00> : vector<32x128xf32>
    %13 = tpu.matmul %12, %11, %cst {dimension_numbers = #tpu.dot_dimension_numbers<[1], [0], [0], [1], [0, 0, 1, 1], [], []>} : vector<32x16xf32>, vector<16x128xf32>, vector<32x128xf32> -> vector<32x128xf32>
    %cst_3 = arith.constant 2.550000e+02 : f32
    %14 = vector.broadcast %cst_3 : f32 to vector<32x128xf32>
    %15 = arith.cmpf one, %13, %14 : vector<32x128xf32>
    %16 = arith.sitofp %4 : vector<32x128xi32> to vector<32x128xf32>
    %17 = arith.cmpf oeq, %16, %13 : vector<32x128xf32>
    %18 = arith.andi %17, %15 : vector<32x128xi1>
    %c127_i32 = arith.constant 127 : i32
    %19 = tpu.dynamic_rotate %0 by %c127_i32 dim 1 : vector<32x128xf32>, i32 -> vector<32x128xf32>
    %c1_i32 = arith.constant 1 : i32
    %20 = tpu.dynamic_rotate %0 by %c1_i32 dim 1 : vector<32x128xf32>, i32 -> vector<32x128xf32>
    %c1_i32_4 = arith.constant 1 : i32
    %21 = vector.broadcast %c1_i32_4 : i32 to vector<32x128xi32>
    %22 = arith.andi %2, %21 : vector<32x128xi32>
    %c0_i32 = arith.constant 0 : i32
    %23 = vector.broadcast %c0_i32 : i32 to vector<32x128xi32>
    %24 = arith.cmpi eq, %22, %23 : vector<32x128xi32>
    %25 = arith.select %24, %19, %20 : vector<32x128xi1>, vector<32x128xf32>
    %26 = arith.maximumf %0, %25 : vector<32x128xf32>
    %c126_i32 = arith.constant 126 : i32
    %27 = tpu.dynamic_rotate %26 by %c126_i32 dim 1 : vector<32x128xf32>, i32 -> vector<32x128xf32>
    %c2_i32 = arith.constant 2 : i32
    %28 = tpu.dynamic_rotate %26 by %c2_i32 dim 1 : vector<32x128xf32>, i32 -> vector<32x128xf32>
    %c2_i32_5 = arith.constant 2 : i32
    %29 = vector.broadcast %c2_i32_5 : i32 to vector<32x128xi32>
    %30 = arith.andi %2, %29 : vector<32x128xi32>
    %c0_i32_6 = arith.constant 0 : i32
    %31 = vector.broadcast %c0_i32_6 : i32 to vector<32x128xi32>
    %32 = arith.cmpi eq, %30, %31 : vector<32x128xi32>
    %33 = arith.select %32, %27, %28 : vector<32x128xi1>, vector<32x128xf32>
    %34 = arith.maximumf %26, %33 : vector<32x128xf32>
    %c124_i32 = arith.constant 124 : i32
    %35 = tpu.dynamic_rotate %34 by %c124_i32 dim 1 : vector<32x128xf32>, i32 -> vector<32x128xf32>
    %c4_i32 = arith.constant 4 : i32
    %36 = tpu.dynamic_rotate %34 by %c4_i32 dim 1 : vector<32x128xf32>, i32 -> vector<32x128xf32>
    %c4_i32_7 = arith.constant 4 : i32
    %37 = vector.broadcast %c4_i32_7 : i32 to vector<32x128xi32>
    %38 = arith.andi %2, %37 : vector<32x128xi32>
    %c0_i32_8 = arith.constant 0 : i32
    %39 = vector.broadcast %c0_i32_8 : i32 to vector<32x128xi32>
    %40 = arith.cmpi eq, %38, %39 : vector<32x128xi32>
    %41 = arith.select %40, %35, %36 : vector<32x128xi1>, vector<32x128xf32>
    %42 = arith.maximumf %34, %41 : vector<32x128xf32>
    %43 = arith.subf %0, %42 : vector<32x128xf32>
    %44 = math.exp %43 : vector<32x128xf32>
    %45 = tpu.iota {dimensions = array<i32: 0>} : vector<128x16xi32>
    %46 = tpu.iota {dimensions = array<i32: 1>} : vector<128x16xi32>
    %c3_i32_9 = arith.constant 3 : i32
    %47 = vector.broadcast %c3_i32_9 : i32 to vector<128x16xi32>
    %48 = arith.shrsi %45, %47 : vector<128x16xi32>
    %49 = arith.cmpi eq, %48, %46 : vector<128x16xi32>
    %50 = arith.extui %49 : vector<128x16xi1> to vector<128x16xi32>
    %51 = arith.sitofp %50 : vector<128x16xi32> to vector<128x16xf32>
    %cst_10 = arith.constant dense<0.000000e+00> : vector<32x16xf32>
    %52 = tpu.matmul %44, %51, %cst_10 {dimension_numbers = #tpu.dot_dimension_numbers<[1], [0], [0], [1], [0, 0, 1, 1], [], []>} : vector<32x128xf32>, vector<128x16xf32>, vector<32x16xf32> -> vector<32x16xf32>
    %c255_i32 = arith.constant 255 : i32
    %53 = vector.broadcast %c255_i32 : i32 to vector<32x16xi32>
    %54 = arith.cmpi ne, %1, %53 : vector<32x16xi32>
    %55 = math.log %52 : vector<32x16xf32>
    %cst_11 = arith.constant 0.000000e+00 : f32
    %56 = vector.broadcast %cst_11 : f32 to vector<32x16xf32>
    %57 = arith.select %54, %55, %56 : vector<32x16xi1>, vector<32x16xf32>
    %58 = vector.shape_cast %57 : vector<32x16xf32> to vector<1x32x16xf32>
    %cst_12 = arith.constant dense<0.000000e+00> : vector<1xf32>
    %59 = vector.multi_reduction <add>, %58, %cst_12 [1, 2] : vector<1x32x16xf32> to vector<1xf32>
    %60 = vector.shape_cast %59 : vector<1xf32> to vector<1x1x1xf32>
    %61 = vector.extract %60[0, 0, 0] : f32 from vector<1x1x1xf32>
    %c0_i32_13 = arith.constant 0 : i32
    %62 = vector.broadcast %c0_i32_13 : i32 to vector<32x128xi32>
    %63 = arith.cmpi eq, %4, %62 : vector<32x128xi32>
    %64 = arith.andi %63, %15 : vector<32x128xi1>
    %cst_14 = arith.constant 0.000000e+00 : f32
    %65 = vector.broadcast %cst_14 : f32 to vector<32x128xf32>
    %66 = arith.select %64, %42, %65 : vector<32x128xi1>, vector<32x128xf32>
    %67 = vector.shape_cast %66 : vector<32x128xf32> to vector<1x32x128xf32>
    %cst_15 = arith.constant dense<0.000000e+00> : vector<1xf32>
    %68 = vector.multi_reduction <add>, %67, %cst_15 [1, 2] : vector<1x32x128xf32> to vector<1xf32>
    %69 = vector.shape_cast %68 : vector<1xf32> to vector<1x1x1xf32>
    %70 = vector.extract %69[0, 0, 0] : f32 from vector<1x1x1xf32>
    %cst_16 = arith.constant 0.000000e+00 : f32
    %71 = vector.broadcast %cst_16 : f32 to vector<32x128xf32>
    %72 = arith.select %18, %0, %71 : vector<32x128xi1>, vector<32x128xf32>
    %73 = vector.shape_cast %72 : vector<32x128xf32> to vector<1x32x128xf32>
    %cst_17 = arith.constant dense<0.000000e+00> : vector<1xf32>
    %74 = vector.multi_reduction <add>, %73, %cst_17 [1, 2] : vector<1x32x128xf32> to vector<1xf32>
    %75 = vector.shape_cast %74 : vector<1xf32> to vector<1x1x1xf32>
    %76 = vector.extract %75[0, 0, 0] : f32 from vector<1x1x1xf32>
    %77 = arith.addf %61, %70 : f32
    %78 = arith.subf %77, %76 : f32
    %79 = vector.broadcast %78 : f32 to vector<1x1x1xf32>
    %c0_18 = arith.constant 0 : index
    %c0_19 = arith.constant 0 : index
    %c0_20 = arith.constant 0 : index
    %80 = vector.load %arg3[%c0_18, %c0_19, %c0_20] : memref<1x1x1xf32, #tpu.memory_space<vmem>>, vector<1x1x1xf32>
    tpu.vector_store %arg3[%c0_18, %c0_19, %c0_20], %79 {strides = array<i32>} : memref<1x1x1xf32, #tpu.memory_space<vmem>>, vector<1x1x1xf32>,
    %81 = arith.extui %54 : vector<32x16xi1> to vector<32x16xi32>
    %82 = arith.sitofp %81 : vector<32x16xi32> to vector<32x16xf32>
    %83 = vector.shape_cast %82 : vector<32x16xf32> to vector<1x32x16xf32>
    %cst_21 = arith.constant dense<0.000000e+00> : vector<1xf32>
    %84 = vector.multi_reduction <add>, %83, %cst_21 [1, 2] : vector<1x32x16xf32> to vector<1xf32>
    %85 = vector.shape_cast %84 : vector<1xf32> to vector<1x1x1xf32>
    %86 = vector.extract %85[0, 0, 0] : f32 from vector<1x1x1xf32>
    %87 = vector.broadcast %86 : f32 to vector<1x1x1xf32>
    %c0_22 = arith.constant 0 : index
    %c0_23 = arith.constant 0 : index
    %c0_24 = arith.constant 0 : index
    %88 = vector.load %arg4[%c0_22, %c0_23, %c0_24] : memref<1x1x1xf32, #tpu.memory_space<vmem>>, vector<1x1x1xf32>
    tpu.vector_store %arg4[%c0_22, %c0_23, %c0_24], %87 {strides = array<i32>} : memref<1x1x1xf32, #tpu.memory_space<vmem>>, vector<1x1x1xf32>,
    return
  }
  func.func @transform_0(%arg0: i32) -> (i32, i32) {
    %c0_i32 = arith.constant 0 : i32
    %c0_i32_0 = arith.constant 0 : i32
    return %arg0, %c0_i32 : i32, i32
  }
  func.func @transform_1(%arg0: i32) -> (i32, i32) {
    %c0_i32 = arith.constant 0 : i32
    %c0_i32_0 = arith.constant 0 : i32
    return %arg0, %c0_i32 : i32, i32
  }
  func.func @transform_2(%arg0: i32) -> (i32, i32, i32) {
    %c0_i32 = arith.constant 0 : i32
    %c0_i32_0 = arith.constant 0 : i32
    %c0_i32_1 = arith.constant 0 : i32
    return %arg0, %c0_i32, %c0_i32_0 : i32, i32, i32
  }
  func.func @transform_3(%arg0: i32) -> (i32, i32, i32) {
    %c0_i32 = arith.constant 0 : i32
    %c0_i32_0 = arith.constant 0 : i32
    %c0_i32_1 = arith.constant 0 : i32
    return %arg0, %c0_i32, %c0_i32_0 : i32, i32, i32
  }
}

</mosaic_0001>

<llo_original>
// kernel: tpu_custom_call.1
$region0: #{tpu_custom_call.1}
  #allocation0 [shape = 'u32[]', space=smem, size = 0x4, offset = 0x4, fixed_abs, tag = 'smem constant byte address 0x4 - core index']
  #allocation1 [shape = 'u32[144,128]{1,0:T(1,128)}', space=vmem, size = 0x12000, scoped, tag = 'internal scratch']
  %s0 = inlined_call_operand.hbm [shape: f32[32,128], index: 0, kind: input, shape index: {}]
  %s1 = inlined_call_operand.hbm [shape: s32[32,16], index: 1, kind: input, shape index: {}]
  %s2 = inlined_call_operand.hbm [shape: f32[1,1,1], index: 2, kind: output, shape index: {0}]
  %s3 = inlined_call_operand.hbm [shape: f32[1,1,1], index: 3, kind: output, shape index: {1}]
  %4 = xla_tuple %s2, %s3
  %s5 = sld [smem:[#allocation0]]
  $region34: #{tpu_custom_call.1} parent=0
    _
  %s7 = ssub.s32 1, %s5
  %s8 = scalar_select 0, %s7, %s5
  $region1: #{tpu_custom_call.1} parent=0
    #allocation2 [shape = 'u8[16384]{0}', space=vmem, size = 0x4000, scoped, tag = 'input window, operand 0, single buffered']
    #allocation3 [shape = 's32[1]{0}', space=sflag, size = 0x4, scoped, tag = 'scoped memory for tpu_custom_call.1']
    #allocation4 [shape = 's32[1]{0}', space=sflag, size = 0x4, scoped, tag = 'scoped memory for tpu_custom_call.1']
    #allocation5 [shape = 'u8[16384]{0}', space=vmem, size = 0x4000, scoped, tag = 'input window, operand 1, single buffered']
    #allocation6 [shape = 's32[1]{0}', space=sflag, size = 0x4, scoped, tag = 'scoped memory for tpu_custom_call.1']
    #allocation7 [shape = 'u8[512]{0}', space=vmem, size = 0x400, scoped, tag = 'output window, operand 0, single buffered']
    #allocation8 [shape = 'u8[512]{0}', space=vmem, size = 0x400, scoped, tag = 'output window, operand 1, single buffered']
    #allocation9 [shape = 's32[1]{0}', space=sflag, size = 0x4, scoped, tag = 'scoped memory for tpu_custom_call.1']
    %9 = vsyncpa [#allocation3], 0
    %10 = vsyncpa [#allocation6], 0
    %11 = vsyncpa [#allocation4], 0
    %12 = vsyncpa [#allocation9], 0
    // Predicated region
    $region2: #{tpu_custom_call.1} parent=1 // pred_check
      _
    $region3: #{tpu_custom_call.1} parent=1 // pred_check_branch
      %14 = sbr.rel (0) target = $region5
    $region4: #{tpu_custom_call.1} parent=1 // pred_region
      %s16 = ssub.s32 512, 512
      %17 = vsyncadd [#allocation3], %s16
      %s18 = sshll.u32 [#allocation2], 4
      %s19 = int_to_ptr.vmem [resolvable:$true] %s18
      %24 = dma.hbm_to_vmem [thread:$0]  %s0, 512, %s19, [#allocation3], 128, 128, 8
    $region5: #{tpu_custom_call.1} parent=1 // pred_fallthru
      _
    // Predicated region
    $region6: #{tpu_custom_call.1} parent=1 // pred_check
      _
    $region7: #{tpu_custom_call.1} parent=1 // pred_check_branch
      %26 = sbr.rel (0) target = $region9
    $region8: #{tpu_custom_call.1} parent=1 // pred_region
      %s28 = ssub.s32 512, 512
      %29 = vsyncadd [#allocation6], %s28
      %s30 = sshll.u32 [#allocation5], 4
      %s31 = int_to_ptr.vmem [resolvable:$true] %s30
      %36 = dma.hbm_to_vmem [thread:$0]  %s1, 512, %s31, [#allocation6], 128, 128, 8
    $region9: #{tpu_custom_call.1} parent=1 // pred_fallthru
      _
    // Predicated region
    $region10: #{tpu_custom_call.1} parent=1 // pred_check
      _
    $region11: #{tpu_custom_call.1} parent=1 // pred_check_branch
      %38 = sbr.rel (0) target = $region13
    $region12: #{tpu_custom_call.1} parent=1 // pred_region
      %39 = dma.done [#allocation3], 512
    $region13: #{tpu_custom_call.1} parent=1 // pred_fallthru
      _
    // Predicated region
    $region14: #{tpu_custom_call.1} parent=1 // pred_check
      _
    $region15: #{tpu_custom_call.1} parent=1 // pred_check_branch
      %41 = sbr.rel (0) target = $region17
    $region16: #{tpu_custom_call.1} parent=1 // pred_region
      %42 = dma.done [#allocation6], 512
    $region17: #{tpu_custom_call.1} parent=1 // pred_fallthru
      _
    %v43 = vld [vmem:[#allocation2] sm:$0xff]
    %v44 = vld [vmem:[#allocation2 + $0x8] sm:$0xff]
    %v45 = vld [vmem:[#allocation2 + $0x10] sm:$0xff]
    %v46 = vld [vmem:[#allocation2 + $0x18] sm:$0xff]
    %v47 = vld [vmem:[#allocation5] sm:$0xff]
    %v48 = vld [vmem:[#allocation5 + $0x8] sm:$0xff]
    %v49 = vld [vmem:[#allocation5 + $0x10] sm:$0xff]
    %v50 = vld [vmem:[#allocation5 + $0x18] sm:$0xff]
    %v51 = vlaneseq
    %v52 = vand.u32 %v51, 127
    %v53 = vand.u32 %v52, 7
    %v54 = vlaneseq
    %v55 = vshrl.u32 %v54, 7
    %v56 = vadd.s32 %v55, 8
    %v57 = vshra.s32 %v52, 3
    %vm58 = vcmp.eq.s32.totalorder %v55, %v57
    %vm59 = vcmp.eq.s32.totalorder %v56, %v57
    %v60 = vsel %vm58, 1, 0
    %v61 = vsel %vm59, 1, 0
    %v62 = vcvt.s32.f32 %v60
    %v63 = vcvt.s32.f32 %v61
    %v64 = vcvt.s32.f32 %v47
    %v65 = vcvt.s32.f32 %v48
    %v66 = vcvt.s32.f32 %v49
    %v67 = vcvt.s32.f32 %v50
    %vm68 = vcmask 130048
    %v70 = vsel %vm68, %v64, 0
    %v73 = vsel %vm68, %v65, 0
    %v76 = vsel %vm68, %v66, 0
    %v79 = vsel %vm68, %v67, 0
    %81 = vmatprep.subr.mxu0 0.0
    %82 = vmatpush1.msra.mxu0 %v62
    %83 = vmatprep.subr.mxu0 0.0
    %84 = vmatpush1.msra.mxu0 %v63
    %85 = vmatprep.subr.mxu0 0.0
    %86 = vmatpush1.msra.mxu0 0.0
    %87 = vmatprep.subr.mxu0 0.0
    %88 = vmatpush1.msra.mxu0 0.0
    %89 = vmatprep.subr.mxu0 0.0
    %90 = vmatpush1.msra.mxu0 0.0
    %91 = vmatprep.subr.mxu0 0.0
    %92 = vmatpush1.msra.mxu0 0.0
    %93 = vmatprep.subr.mxu0 0.0
    %94 = vmatpush1.msra.mxu0 0.0
    %95 = vmatprep.subr.mxu0 0.0
    %96 = vmatpush1.msra.mxu0 0.0
    %97 = vmatprep.subr.mxu0 0.0
    %98 = vmatpush1.msra.mxu0 0.0
    %99 = vmatprep.subr.mxu0 0.0
    %100 = vmatpush1.msra.mxu0 0.0
    %101 = vmatprep.subr.mxu0 0.0
    %102 = vmatpush1.msra.mxu0 0.0
    %103 = vmatprep.subr.mxu0 0.0
    %104 = vmatpush1.msra.mxu0 0.0
    %105 = vmatprep.subr.mxu0 0.0
    %106 = vmatpush1.msra.mxu0 0.0
    %107 = vmatprep.subr.mxu0 0.0
    %108 = vmatpush1.msra.mxu0 0.0
    %109 = vmatprep.subr.mxu0 0.0
    %110 = vmatpush1.msra.mxu0 0.0
    %111 = vmatprep.subr.mxu0 0.0
    %112 = vmatpush1.msra.mxu0 0.0
    %113 = vmatprep.subr.mxu0 0.0
    %114 = vmatpush1.msra.mxu0 0.0
    %115 = vmatprep.subr.mxu0 0.0
    %116 = vmatpush1.msra.mxu0 0.0
    %117 = vmatprep.subr.mxu0 0.0
    %118 = vmatpush1.msra.mxu0 0.0
    %119 = vmatprep.subr.mxu0 0.0
    %120 = vmatpush1.msra.mxu0 0.0
    %121 = vmatprep.subr.mxu0 0.0
    %122 = vmatpush1.msra.mxu0 0.0
    %123 = vmatprep.subr.mxu0 0.0
    %124 = vmatpush1.msra.mxu0 0.0
    %125 = vmatprep.subr.mxu0 0.0
    %126 = vmatpush1.msra.mxu0 0.0
    %127 = vmatprep.subr.mxu0 0.0
    %128 = vmatpush1.msra.mxu0 0.0
    %129 = vmatprep.subr.mxu0 0.0
    %130 = vmatpush1.msra.mxu0 0.0
    %131 = vmatprep.subr.mxu0 0.0
    %132 = vmatpush1.msra.mxu0 0.0
    %133 = vmatprep.subr.mxu0 0.0
    %134 = vmatpush1.msra.mxu0 0.0
    %135 = vmatprep.subr.mxu0 0.0
    %136 = vmatpush1.msra.mxu0 0.0
    %137 = vmatprep.subr.mxu0 0.0
    %138 = vmatpush1.msra.mxu0 0.0
    %139 = vmatprep.subr.mxu0 0.0
    %140 = vmatpush1.msra.mxu0 0.0
    %141 = vmatprep.subr.mxu0 0.0
    %142 = vmatpush1.msra.mxu0 0.0
    %143 = vmatprep.subr.mxu0 0.0
    %144 = vmatpush1.msra.mxu0 0.0
    %145 = vmatprep.mubr.f32.mxu0 0.0
    %146 = vmatmul.mubr.f32.gmra.mrb[0].mxu0 %v70
    %v147 = vpop.f32.mrb[0].mxu0
    %v148 = vadd.f32 0.0, %v147
    %v149 = vpop.f32.mrb[0].mxu0
    %150 = vmatprep.mubr.f32.mxu0 0.0
    %151 = vmatmul.mubr.f32.gmra.mrb[0].mxu0 %v73
    %v152 = vpop.f32.mrb[0].mxu0
    %v153 = vadd.f32 0.0, %v152
    %v154 = vpop.f32.mrb[0].mxu0
    %155 = vmatprep.mubr.f32.mxu0 0.0
    %156 = vmatmul.mubr.f32.gmra.mrb[0].mxu0 %v76
    %v157 = vpop.f32.mrb[0].mxu0
    %v158 = vadd.f32 0.0, %v157
    %v159 = vpop.f32.mrb[0].mxu0
    %160 = vmatprep.mubr.f32.mxu0 0.0
    %161 = vmatmul.mubr.f32.gmra.mrb[0].mxu0 %v79
    %v162 = vpop.f32.mrb[0].mxu0
    %v163 = vadd.f32 0.0, %v162
    %v164 = vpop.f32.mrb[0].mxu0
    %165 = vdwg.mxu0
    %vm166 = vcmp.ne.f32.partialorder %v148, 255.0
    %vm167 = vcmp.ne.f32.partialorder %v153, 255.0
    %vm168 = vcmp.ne.f32.partialorder %v158, 255.0
    %vm169 = vcmp.ne.f32.partialorder %v163, 255.0
    %v170 = vcvt.s32.f32 %v53
    %vm171 = vcmp.eq.f32.partialorder %v170, %v148
    %vm172 = vcmp.eq.f32.partialorder %v170, %v153
    %vm173 = vcmp.eq.f32.partialorder %v170, %v158
    %vm174 = vcmp.eq.f32.partialorder %v170, %v163
    %vm175 = vmand %vm171, %vm166
    %vm176 = vmand %vm172, %vm167
    %vm177 = vmand %vm173, %vm168
    %vm178 = vmand %vm174, %vm169
    %179 = vrot.lane.b32.xlu0 %v43, 127
    %v180 = vpop.permute.xlu0 %179
    %181 = vrot.lane.b32.xlu0 %v44, 127
    %v182 = vpop.permute.xlu0 %181
    %183 = vrot.lane.b32.xlu0 %v45, 127
    %v184 = vpop.permute.xlu0 %183
    %185 = vrot.lane.b32.xlu0 %v46, 127
    %v186 = vpop.permute.xlu0 %185
    %187 = vrot.lane.b32.xlu0 %v43, 1
    %v188 = vpop.permute.xlu0 %187
    %189 = vrot.lane.b32.xlu0 %v44, 1
    %v190 = vpop.permute.xlu0 %189
    %191 = vrot.lane.b32.xlu0 %v45, 1
    %v192 = vpop.permute.xlu0 %191
    %193 = vrot.lane.b32.xlu0 %v46, 1
    %v194 = vpop.permute.xlu0 %193
    %v195 = vand.u32 %v52, 1
    %vm196 = vcmp.eq.s32.totalorder %v195, 0
    %v197 = vsel %vm196, %v180, %v188
    %v198 = vsel %vm196, %v182, %v190
    %v199 = vsel %vm196, %v184, %v192
    %v200 = vsel %vm196, %v186, %v194
    %v201 = vmax.f32 %v43, %v197
    %v202 = vmax.f32 %v44, %v198
    %v203 = vmax.f32 %v45, %v199
    %v204 = vmax.f32 %v46, %v200
    %205 = vrot.lane.b32.xlu0 %v201, 126
    %v206 = vpop.permute.xlu0 %205
    %207 = vrot.lane.b32.xlu0 %v202, 126
    %v208 = vpop.permute.xlu0 %207
    %209 = vrot.lane.b32.xlu0 %v203, 126
    %v210 = vpop.permute.xlu0 %209
    %211 = vrot.lane.b32.xlu0 %v204, 126
    %v212 = vpop.permute.xlu0 %211
    %213 = vrot.lane.b32.xlu0 %v201, 2
    %v214 = vpop.permute.xlu0 %213
    %215 = vrot.lane.b32.xlu0 %v202, 2
    %v216 = vpop.permute.xlu0 %215
    %217 = vrot.lane.b32.xlu0 %v203, 2
    %v218 = vpop.permute.xlu0 %217
    %219 = vrot.lane.b32.xlu0 %v204, 2
    %v220 = vpop.permute.xlu0 %219
    %v221 = vand.u32 %v52, 2
    %vm222 = vcmp.eq.s32.totalorder %v221, 0
    %v223 = vsel %vm222, %v206, %v214
    %v224 = vsel %vm222, %v208, %v216
    %v225 = vsel %vm222, %v210, %v218
    %v226 = vsel %vm222, %v212, %v220
    %v227 = vmax.f32 %v201, %v223
    %v228 = vmax.f32 %v202, %v224
    %v229 = vmax.f32 %v203, %v225
    %v230 = vmax.f32 %v204, %v226
    %231 = vrot.lane.b32.xlu0 %v227, 124
    %v232 = vpop.permute.xlu0 %231
    %233 = vrot.lane.b32.xlu0 %v228, 124
    %v234 = vpop.permute.xlu0 %233
    %235 = vrot.lane.b32.xlu0 %v229, 124
    %v236 = vpop.permute.xlu0 %235
    %237 = vrot.lane.b32.xlu0 %v230, 124
    %v238 = vpop.permute.xlu0 %237
    %239 = vrot.lane.b32.xlu0 %v227, 4
    %v240 = vpop.permute.xlu0 %239
    %241 = vrot.lane.b32.xlu0 %v228, 4
    %v242 = vpop.permute.xlu0 %241
    %243 = vrot.lane.b32.xlu0 %v229, 4
    %v244 = vpop.permute.xlu0 %243
    %245 = vrot.lane.b32.xlu0 %v230, 4
    %v246 = vpop.permute.xlu0 %245
    %v247 = vand.u32 %v52, 4
    %vm248 = vcmp.eq.s32.totalorder %v247, 0
    %v249 = vsel %vm248, %v232, %v240
    %v250 = vsel %vm248, %v234, %v242
    %v251 = vsel %vm248, %v236, %v244
    %v252 = vsel %vm248, %v238, %v246
    %v253 = vmax.f32 %v227, %v249
    %v254 = vmax.f32 %v228, %v250
    %v255 = vmax.f32 %v229, %v251
    %v256 = vmax.f32 %v230, %v252
    %v257 = vsub.f32 %v43, %v253
    %v258 = vsub.f32 %v44, %v254
    %v259 = vsub.f32 %v45, %v255
    %v260 = vsub.f32 %v46, %v256
    %v261 = vmul.f32 %v257, 1.442695
    %v262 = vpow.pop %v261
    %v263 = vmul.f32 %v258, 1.442695
    %v264 = vpow.pop %v263
    %v265 = vmul.f32 %v259, 1.442695
    %v266 = vpow.pop %v265
    %v267 = vmul.f32 %v260, 1.442695
    %v268 = vpow.pop %v267
    %v269 = vadd.s32 %v55, 16
    %v270 = vadd.s32 %v55, 24
    %v271 = vadd.s32 %v55, 32
    %v272 = vadd.s32 %v55, 40
    %v273 = vadd.s32 %v55, 48
    %v274 = vadd.s32 %v55, 56
    %v275 = vadd.s32 %v55, 64
    %v276 = vadd.s32 %v55, 72
    %v277 = vadd.s32 %v55, 80
    %v278 = vadd.s32 %v55, 88
    %v279 = vadd.s32 %v55, 96
    %v280 = vadd.s32 %v55, 104
    %v281 = vadd.s32 %v55, 112
    %v282 = vadd.s32 %v55, 120
    %v283 = vshra.s32 %v55, 3
    %v284 = vshra.s32 %v56, 3
    %v285 = vshra.s32 %v269, 3
    %v286 = vshra.s32 %v270, 3
    %v287 = vshra.s32 %v271, 3
    %v288 = vshra.s32 %v272, 3
    %v289 = vshra.s32 %v273, 3
    %v290 = vshra.s32 %v274, 3
    %v291 = vshra.s32 %v275, 3
    %v292 = vshra.s32 %v276, 3
    %v293 = vshra.s32 %v277, 3
    %v294 = vshra.s32 %v278, 3
    %v295 = vshra.s32 %v279, 3
    %v296 = vshra.s32 %v280, 3
    %v297 = vshra.s32 %v281, 3
    %v298 = vshra.s32 %v282, 3
    %vm299 = vcmp.eq.s32.totalorder %v283, %v52
    %vm300 = vcmp.eq.s32.totalorder %v284, %v52
    %vm301 = vcmp.eq.s32.totalorder %v285, %v52
    %vm302 = vcmp.eq.s32.totalorder %v286, %v52
    %vm303 = vcmp.eq.s32.totalorder %v287, %v52
    %vm304 = vcmp.eq.s32.totalorder %v288, %v52
    %vm305 = vcmp.eq.s32.totalorder %v289, %v52
    %vm306 = vcmp.eq.s32.totalorder %v290, %v52
    %vm307 = vcmp.eq.s32.totalorder %v291, %v52
    %vm308 = vcmp.eq.s32.totalorder %v292, %v52
    %vm309 = vcmp.eq.s32.totalorder %v293, %v52
    %vm310 = vcmp.eq.s32.totalorder %v294, %v52
    %vm311 = vcmp.eq.s32.totalorder %v295, %v52
    %vm312 = vcmp.eq.s32.totalorder %v296, %v52
    %vm313 = vcmp.eq.s32.totalorder %v297, %v52
    %vm314 = vcmp.eq.s32.totalorder %v298, %v52
    %v315 = vsel %vm299, 1, 0
    %v316 = vsel %vm300, 1, 0
    %v317 = vsel %vm301, 1, 0
    %v318 = vsel %vm302, 1, 0
    %v319 = vsel %vm303, 1, 0
    %v320 = vsel %vm304, 1, 0
    %v321 = vsel %vm305, 1, 0
    %v322 = vsel %vm306, 1, 0
    %v323 = vsel %vm307, 1, 0
    %v324 = vsel %vm308, 1, 0
    %v325 = vsel %vm309, 1, 0
    %v326 = vsel %vm310, 1, 0
    %v327 = vsel %vm311, 1, 0
    %v328 = vsel %vm312, 1, 0
    %v329 = vsel %vm313, 1, 0
    %v330 = vsel %vm314, 1, 0
    %v331 = vcvt.s32.f32 %v315
    %v332 = vcvt.s32.f32 %v316
    %v333 = vcvt.s32.f32 %v317
    %v334 = vcvt.s32.f32 %v318
    %v335 = vcvt.s32.f32 %v319
    %v336 = vcvt.s32.f32 %v320
    %v337 = vcvt.s32.f32 %v321
    %v338 = vcvt.s32.f32 %v322
    %v339 = vcvt.s32.f32 %v323
    %v340 = vcvt.s32.f32 %v324
    %v341 = vcvt.s32.f32 %v325
    %v342 = vcvt.s32.f32 %v326
    %v343 = vcvt.s32.f32 %v327
    %v344 = vcvt.s32.f32 %v328
    %v345 = vcvt.s32.f32 %v329
    %v346 = vcvt.s32.f32 %v330
    %347 = vmatprep.subr.mxu0 0.0
    %348 = vmatpush1.msra.mxu0 %v331
    %349 = vmatprep.subr.mxu0 0.0
    %350 = vmatpush1.msra.mxu0 %v332
    %351 = vmatprep.subr.mxu0 0.0
    %352 = vmatpush1.msra.mxu0 %v333
    %353 = vmatprep.subr.mxu0 0.0
    %354 = vmatpush1.msra.mxu0 %v334
    %355 = vmatprep.subr.mxu0 0.0
    %356 = vmatpush1.msra.mxu0 %v335
    %357 = vmatprep.subr.mxu0 0.0
    %358 = vmatpush1.msra.mxu0 %v336
    %359 = vmatprep.subr.mxu0 0.0
    %360 = vmatpush1.msra.mxu0 %v337
    %361 = vmatprep.subr.mxu0 0.0
    %362 = vmatpush1.msra.mxu0 %v338
    %363 = vmatprep.subr.mxu0 0.0
    %364 = vmatpush1.msra.mxu0 %v339
    %365 = vmatprep.subr.mxu0 0.0
    %366 = vmatpush1.msra.mxu0 %v340
    %367 = vmatprep.subr.mxu0 0.0
    %368 = vmatpush1.msra.mxu0 %v341
    %369 = vmatprep.subr.mxu0 0.0
    %370 = vmatpush1.msra.mxu0 %v342
    %371 = vmatprep.subr.mxu0 0.0
    %372 = vmatpush1.msra.mxu0 %v343
    %373 = vmatprep.subr.mxu0 0.0
    %374 = vmatpush1.msra.mxu0 %v344
    %375 = vmatprep.subr.mxu0 0.0
    %376 = vmatpush1.msra.mxu0 %v345
    %377 = vmatprep.subr.mxu0 0.0
    %378 = vmatpush1.msra.mxu0 %v346
    %379 = vmatprep.subr.mxu0 0.0
    %380 = vmatpush1.msra.mxu0 0.0
    %381 = vmatprep.subr.mxu0 0.0
    %382 = vmatpush1.msra.mxu0 0.0
    %383 = vmatprep.subr.mxu0 0.0
    %384 = vmatpush1.msra.mxu0 0.0
    %385 = vmatprep.subr.mxu0 0.0
    %386 = vmatpush1.msra.mxu0 0.0
    %387 = vmatprep.subr.mxu0 0.0
    %388 = vmatpush1.msra.mxu0 0.0
    %389 = vmatprep.subr.mxu0 0.0
    %390 = vmatpush1.msra.mxu0 0.0
    %391 = vmatprep.subr.mxu0 0.0
    %392 = vmatpush1.msra.mxu0 0.0
    %393 = vmatprep.subr.mxu0 0.0
    %394 = vmatpush1.msra.mxu0 0.0
    %395 = vmatprep.subr.mxu0 0.0
    %396 = vmatpush1.msra.mxu0 0.0
    %397 = vmatprep.subr.mxu0 0.0
    %398 = vmatpush1.msra.mxu0 0.0
    %399 = vmatprep.subr.mxu0 0.0
    %400 = vmatpush1.msra.mxu0 0.0
    %401 = vmatprep.subr.mxu0 0.0
    %402 = vmatpush1.msra.mxu0 0.0
    %403 = vmatprep.subr.mxu0 0.0
    %404 = vmatpush1.msra.mxu0 0.0
    %405 = vmatprep.subr.mxu0 0.0
    %406 = vmatpush1.msra.mxu0 0.0
    %407 = vmatprep.subr.mxu0 0.0
    %408 = vmatpush1.msra.mxu0 0.0
    %409 = vmatprep.subr.mxu0 0.0
    %410 = vmatpush1.msra.mxu0 0.0
    %411 = vmatprep.mubr.f32.mxu0 0.0
    %412 = vmatmul.mubr.f32.gmra.mrb[0].mxu0 %v262
    %v413 = vpop.f32.mrb[0].mxu0
    %v414 = vadd.f32 0.0, %v413
    %v415 = vpop.f32.mrb[0].mxu0
    %416 = vmatprep.mubr.f32.mxu0 0.0
    %417 = vmatmul.mubr.f32.gmra.mrb[0].mxu0 %v264
    %v418 = vpop.f32.mrb[0].mxu0
    %v419 = vadd.f32 0.0, %v418
    %v420 = vpop.f32.mrb[0].mxu0
    %421 = vmatprep.mubr.f32.mxu0 0.0
    %422 = vmatmul.mubr.f32.gmra.mrb[0].mxu0 %v266
    %v423 = vpop.f32.mrb[0].mxu0
    %v424 = vadd.f32 0.0, %v423
    %v425 = vpop.f32.mrb[0].mxu0
    %426 = vmatprep.mubr.f32.mxu0 0.0
    %427 = vmatmul.mubr.f32.gmra.mrb[0].mxu0 %v268
    %v428 = vpop.f32.mrb[0].mxu0
    %v429 = vadd.f32 0.0, %v428
    %v430 = vpop.f32.mrb[0].mxu0
    %431 = vdwg.mxu0
    %vm432 = vcmp.ne.s32.totalorder %v47, 255
    %vm433 = vcmp.ne.s32.totalorder %v48, 255
    %vm434 = vcmp.ne.s32.totalorder %v49, 255
    %vm435 = vcmp.ne.s32.totalorder %v50, 255
    %v436 = vlog2.pop %v414
    %v437 = vmul.f32 %v436, 0.6931472
    %v438 = vlog2.pop %v419
    %v439 = vmul.f32 %v438, 0.6931472
    %v440 = vlog2.pop %v424
    %v441 = vmul.f32 %v440, 0.6931472
    %v442 = vlog2.pop %v429
    %v443 = vmul.f32 %v442, 0.6931472
    %v444 = vsel %vm432, %v437, 0.0
    %v445 = vsel %vm433, %v439, 0.0
    %v446 = vsel %vm434, %v441, 0.0
    %v447 = vsel %vm435, %v443, 0.0
    %v448 = vsel %vm68, %v444, 0.0
    %v449 = vsel %vm68, %v445, 0.0
    %v450 = vadd.f32 %v448, %v449
    %v451 = vsel %vm68, %v446, 0.0
    %v452 = vadd.f32 %v450, %v451
    %v453 = vsel %vm68, %v447, 0.0
    %v454 = vadd.f32 %v452, %v453
    %455 = vadd.xlane.f32.xlu0 %v454
    %v456 = vpop.xlane.xlu0 %455
    %v457 = vrot.slane %v456, 4
    %v458 = vadd.f32 %v456, %v457
    %v459 = vrot.slane %v458, 2
    %v460 = vadd.f32 %v458, %v459
    %v461 = vrot.slane %v460, 1
    %v462 = vadd.f32 %v460, %v461
    %s463 = vtos %v462
    %vm464 = vcmp.eq.s32.totalorder %v53, 0
    %vm465 = vmand %vm464, %vm166
    %vm466 = vmand %vm464, %vm167
    %vm467 = vmand %vm464, %vm168
    %vm468 = vmand %vm464, %vm169
    %v469 = vsel %vm465, %v253, 0.0
    %v470 = vsel %vm466, %v254, 0.0
    %v471 = vsel %vm467, %v255, 0.0
    %v472 = vsel %vm468, %v256, 0.0
    %v473 = vadd.f32 %v469, %v470
    %v474 = vadd.f32 %v473, %v471
    %v475 = vadd.f32 %v474, %v472
    %476 = vadd.xlane.f32.xlu0 %v475
    %v477 = vpop.xlane.xlu0 %476
    %v478 = vrot.slane %v477, 4
    %v479 = vadd.f32 %v477, %v478
    %v480 = vrot.slane %v479, 2
    %v481 = vadd.f32 %v479, %v480
    %v482 = vrot.slane %v481, 1
    %v483 = vadd.f32 %v481, %v482
    %s484 = vtos %v483
    %v485 = vsel %vm175, %v43, 0.0
    %v486 = vsel %vm176, %v44, 0.0
    %v487 = vsel %vm177, %v45, 0.0
    %v488 = vsel %vm178, %v46, 0.0
    %v489 = vadd.f32 %v485, %v486
    %v490 = vadd.f32 %v489, %v487
    %v491 = vadd.f32 %v490, %v488
    %492 = vadd.xlane.f32.xlu0 %v491
    %v493 = vpop.xlane.xlu0 %492
    %v494 = vrot.slane %v493, 4
    %v495 = vadd.f32 %v493, %v494
    %v496 = vrot.slane %v495, 2
    %v497 = vadd.f32 %v495, %v496
    %v498 = vrot.slane %v497, 1
    %v499 = vadd.f32 %v497, %v498
    %s500 = vtos %v499
    %s501 = sadd.f32 %s463, %s484
    %s502 = ssub.f32 %s501, %s500
    %v503 = vstv %s502
    %vm504 = vcmask 0
    %505 = vst.msk [vmem:[#allocation7] sm:$0x1] %vm504, %v503
    %v506 = vsel %vm432, 1, 0
    %v507 = vsel %vm433, 1, 0
    %v508 = vsel %vm434, 1, 0
    %v509 = vsel %vm435, 1, 0
    %v510 = vcvt.s32.f32 %v506
    %v511 = vcvt.s32.f32 %v507
    %v512 = vcvt.s32.f32 %v508
    %v513 = vcvt.s32.f32 %v509
    %v514 = vsel %vm68, %v510, 0.0
    %v515 = vsel %vm68, %v511, 0.0
    %v516 = vadd.f32 %v514, %v515
    %v517 = vsel %vm68, %v512, 0.0
    %v518 = vadd.f32 %v516, %v517
    %v519 = vsel %vm68, %v513, 0.0
    %v520 = vadd.f32 %v518, %v519
    %521 = vadd.xlane.f32.xlu0 %v520
    %v522 = vpop.xlane.xlu0 %521
    %v523 = vrot.slane %v522, 4
    %v524 = vadd.f32 %v522, %v523
    %v525 = vrot.slane %v524, 2
    %v526 = vadd.f32 %v524, %v525
    %v527 = vrot.slane %v526, 1
    %v528 = vadd.f32 %v526, %v527
    %s529 = vtos %v528
    %v530 = vstv %s529
    %531 = vst.msk [vmem:[#allocation8] sm:$0x1] %vm504, %v530
    // Predicated region
    $region18: #{tpu_custom_call.1} parent=1 // pred_check
      _
    $region19: #{tpu_custom_call.1} parent=1 // pred_check_branch
      %533 = sbr.rel (0) target = $region21
    $region20: #{tpu_custom_call.1} parent=1 // pred_region
      %s535 = ssub.s32 16, 16
      %536 = vsyncadd [#allocation4], %s535
      %s538 = sshll.u32 [#allocation7], 4
      %s539 = int_to_ptr.vmem [resolvable:$true] %s538
      %541 = dma.vmem_to_hbm [thread:$0]  %s539, 16, %s2, [#allocation4]
    $region21: #{tpu_custom_call.1} parent=1 // pred_fallthru
      _
    // Predicated region
    $region22: #{tpu_custom_call.1} parent=1 // pred_check
      _
    $region23: #{tpu_custom_call.1} parent=1 // pred_check_branch
      %543 = sbr.rel (0) target = $region25
    $region24: #{tpu_custom_call.1} parent=1 // pred_region
      %s545 = ssub.s32 16, 16
      %546 = vsyncadd [#allocation9], %s545
      %s548 = sshll.u32 [#allocation8], 4
      %s549 = int_to_ptr.vmem [resolvable:$true] %s548
      %551 = dma.vmem_to_hbm [thread:$0]  %s549, 16, %s3, [#allocation9]
    $region25: #{tpu_custom_call.1} parent=1 // pred_fallthru
      _
    // Predicated region
    $region26: #{tpu_custom_call.1} parent=1 // pred_check
      _
    $region27: #{tpu_custom_call.1} parent=1 // pred_check_branch
      %553 = sbr.rel (0) target = $region29
    $region28: #{tpu_custom_call.1} parent=1 // pred_region
      %554 = dma.done [#allocation4], 16
    $region29: #{tpu_custom_call.1} parent=1 // pred_fallthru
      _
    // Predicated region
    $region30: #{tpu_custom_call.1} parent=1 // pred_check
      _
    $region31: #{tpu_custom_call.1} parent=1 // pred_check_branch
      %556 = sbr.rel (0) target = $region33
    $region32: #{tpu_custom_call.1} parent=1 // pred_region
      %557 = dma.done [#allocation9], 16
    $region33: #{tpu_custom_call.1} parent=1 // pred_fallthru
      _
    %558 = vsyncpa [#allocation3], 1
    %559 = vsyncpa [#allocation6], 1
    %560 = vsyncpa [#allocation4], 1
    %561 = vsyncpa [#allocation9], 1

</llo_original>
